<compile_context>
chip_gen: v7x
topology: tpu7x:2x2x1
jax: 0.10.0
libtpu: 0.0.40
codegen_flags: <defaults>
</compile_context>

<pallas_src>
import functools

import jax
import jax.numpy as jnp
from jax.experimental import pallas as pl
from jax.experimental.pallas import tpu as pltpu


def _bisim_kernel(si1_ref, sj1_ref, si2_ref, sj2_ref, dsij_ref, out_ref,
                  acc_ref, *, p, use_mxu):
    t = pl.program_id(1)
    num_t = pl.num_programs(1)

    # Zero the per-slice accumulators at the start of each slice's tile loop.
    @pl.when(t == 0)
    def _init():
        acc_ref[0] = jnp.float32(0.0)
        acc_ref[1] = jnp.float32(0.0)
        acc_ref[2] = jnp.float32(0.0)

    # Cast once per tile (keeps all arithmetic / sqrt on the f32 path).
    si1 = si1_ref[...].astype(jnp.float32)
    sj1 = sj1_ref[...].astype(jnp.float32)
    si2 = si2_ref[...].astype(jnp.float32)
    sj2 = sj2_ref[...].astype(jnp.float32)
    dsij = dsij_ref[...].astype(jnp.float32)          # (TB, 1)

    D = si1.shape[1]
    if use_mxu:
        # Large D: do the per-row reduction on the otherwise-idle MXU.
        ones_col = jnp.ones((D, 1), jnp.float32)

        def row_sum(x):
            return jnp.dot(x, ones_col, preferred_element_type=jnp.float32)
    else:
        def row_sum(x):
            return jnp.sum(x, axis=1, keepdims=True)

    def pnorm(x, y):                                   # (TB, D) -> (TB, 1)
        diff = x - y
        if p == 2:
            # single sum-of-squares + one sqrt per row (EUP)
            return jnp.sqrt(row_sum(diff * diff))
        elif p == 1:
            return row_sum(jnp.abs(diff))
        else:
            pe = float(p)
            return jnp.power(row_sum(jnp.power(jnp.abs(diff), pe)), 1.0 / pe)

    d1 = pnorm(si1, sj1)                               # (TB, 1)
    d2 = pnorm(si2, sj2)                               # (TB, 1)

    e_bb = d1 - dsij
    e_icc = si1 - si2
    e_cc = d1 - d2

    # Raw partial sums (associative -> safe to accumulate across tiles).
    acc_ref[0] += jnp.sum(e_bb * e_bb)
    acc_ref[1] += jnp.sum(e_icc * e_icc)
    acc_ref[2] += jnp.sum(e_cc * e_cc)

    # Flush per-slice partial sums into the lane-dense (1, 8, 128) output block.
    @pl.when(t == num_t - 1)
    def _finalize():
        sub = jax.lax.broadcasted_iota(jnp.int32, (1, 8, 128), 1)
        lane = jax.lax.broadcasted_iota(jnp.int32, (1, 8, 128), 2)
        first_row = sub == 0
        vals = jnp.where(first_row & (lane == 0), acc_ref[0], jnp.float32(0.0))
        vals = jnp.where(first_row & (lane == 1), acc_ref[1], vals)
        vals = jnp.where(first_row & (lane == 2), acc_ref[2], vals)
        out_ref[...] = vals


def _round_up(x, m):
    return ((x + m - 1) // m) * m


def _choose_geometry(B, D):
    """Pick (num_slices, TB, T): TB multiple of 8, num_slices*TB*T >= B.

    TB is capped by a conservative VMEM budget (v7x-safe, including double
    buffering of the 4 feature tiles + dsij), then re-balanced across T so
    the padded batch is as small as possible.
    """
    # Megacore split only when it does not force extra padding on small batches.
    num_slices = 2 if (B >= 16 and B % 16 == 0) else 1

    bytes_per_row = (4 * D + 1) * 4                    # 4 feature tiles + dsij, f32
    budget = 8 * 1024 * 1024                           # << 32 MiB scoped VMEM on v7x
    tb_budget = max(8, ((budget // (2 * bytes_per_row)) // 8) * 8)  # x2: double buffer
    tb_budget = min(tb_budget, 2048)

    rows_per_slice = -(-B // num_slices)               # ceil
    T = max(1, -(-rows_per_slice // tb_budget))        # tiles per slice
    TB = _round_up(-(-rows_per_slice // T), 8)         # re-balance -> minimal pad
    return num_slices, TB, T


def bisimulation_loss(phi_si_theta1, phi_sj_theta1, phi_si_theta2,
                      phi_sj_theta2, d_sij,
                      lambda_BB=1.0, lambda_ICC=0.1, lambda_CC=0.1, p=2):
    """Returns (total_loss, (L_BB, L_ICC, L_CC)) as float32 scalars."""
    B, D = phi_si_theta1.shape

    num_slices, TB, T = _choose_geometry(B, D)
    B_pad = num_slices * TB * T
    pad = B_pad - B

    def pad_rows(x):
        # Zero rows contribute exactly 0 to every accumulated sum.
        return jnp.pad(x, ((0, pad), (0, 0))) if pad else x

    si1 = pad_rows(phi_si_theta1)
    sj1 = pad_rows(phi_sj_theta1)
    si2 = pad_rows(phi_si_theta2)
    sj2 = pad_rows(phi_sj_theta2)
    dsij2d = pad_rows(d_sij.reshape(B, 1))

    kernel = functools.partial(_bisim_kernel, p=p, use_mxu=(D >= 256))

    feat_spec = pl.BlockSpec((TB, D), lambda c, t: (c * T + t, 0))
    dsij_spec = pl.BlockSpec((TB, 1), lambda c, t: (c * T + t, 0))
    out_spec = pl.BlockSpec((1, 8, 128), lambda c, t: (c, 0, 0))

    partials = pl.pallas_call(
        kernel,
        out_shape=jax.ShapeDtypeStruct((num_slices, 8, 128), jnp.float32),
        grid_spec=pltpu.PrefetchScalarGridSpec(
            num_scalar_prefetch=0,
            grid=(num_slices, T),
            in_specs=[feat_spec, feat_spec, feat_spec, feat_spec, dsij_spec],
            out_specs=out_spec,
            scratch_shapes=[pltpu.SMEM((3,), jnp.float32)],
        ),
        compiler_params=pltpu.CompilerParams(
            dimension_semantics=("parallel", "arbitrary")),
    )(si1, sj1, si2, sj2, dsij2d)

    # Tiny scalar epilogue: combine per-slice partial sums, scale, apply lambdas.
    sums = jnp.sum(partials[:, 0, 0:3], axis=0)        # (3,)
    Bf = jnp.float32(B)
    L_BB = sums[0] / Bf
    L_ICC = sums[1] / (Bf * jnp.float32(D))
    L_CC = sums[2] / Bf
    total = (jnp.float32(lambda_BB) * L_BB
             + jnp.float32(lambda_ICC) * L_ICC
             + jnp.float32(lambda_CC) * L_CC)
    return total, (L_BB, L_ICC, L_CC)


def _reference(si1, sj1, si2, sj2, dsij, lambda_BB=1.0, lambda_ICC=0.1,
               lambda_CC=0.1, p=2):
    d1 = jnp.linalg.norm(si1 - sj1, ord=p, axis=1)
    d2 = jnp.linalg.norm(si2 - sj2, ord=p, axis=1)
    L_BB = jnp.mean((d1 - dsij) ** 2)
    L_ICC = jnp.mean((si1 - si2) ** 2)
    L_CC = jnp.mean((d1 - d2) ** 2)
    total = lambda_BB * L_BB + lambda_ICC * L_ICC + lambda_CC * L_CC
    return total, (L_BB, L_ICC, L_CC)


def _make_inputs(key, B, D):
    k1, k2, k3, k4, k5 = jax.random.split(key, 5)
    si1 = jax.random.normal(k1, (B, D), dtype=jnp.float32)
    sj1 = jax.random.normal(k2, (B, D), dtype=jnp.float32)
    si2 = jax.random.normal(k3, (B, D), dtype=jnp.float32)
    sj2 = jax.random.normal(k4, (B, D), dtype=jnp.float32)
    dsij = jnp.abs(jax.random.normal(k5, (B,), dtype=jnp.float32))
    return si1, sj1, si2, sj2, dsij


def _check(key, B, D):
    si1, sj1, si2, sj2, dsij = _make_inputs(key, B, D)
    total, (L_BB, L_ICC, L_CC) = bisimulation_loss(si1, sj1, si2, sj2, dsij)
    jax.block_until_ready(total)
    ref_total, (r_BB, r_ICC, r_CC) = _reference(si1, sj1, si2, sj2, dsij)
    assert jnp.allclose(total, ref_total, atol=1e-5, rtol=1e-5)
    assert jnp.allclose(L_BB, r_BB, atol=1e-5, rtol=1e-5)
    assert jnp.allclose(L_ICC, r_ICC, atol=1e-5, rtol=1e-5)
    assert jnp.allclose(L_CC, r_CC, atol=1e-5, rtol=1e-5)


if __name__ == "__main__":
    # Batch / rep_dim consistent with the module's [B, hidden_dim] inputs.
    _check(jax.random.PRNGKey(0), B=8, D=32)     # single slice, no padding
    _check(jax.random.PRNGKey(1), B=13, D=32)    # ragged batch -> zero-pad path
    _check(jax.random.PRNGKey(2), B=32, D=32)    # 2-slice (megacore) path
    print("KERNEL_OK")
</pallas_src>

<mosaic_0001>
module attributes {stable_mosaic.version = 11 : i64} {
  func.func @_bisim_kernel(%arg0: i32, %arg1: i32, %arg2: memref<8x32xf32, #tpu.memory_space<vmem>>, %arg3: memref<8x32xf32, #tpu.memory_space<vmem>>, %arg4: memref<8x32xf32, #tpu.memory_space<vmem>>, %arg5: memref<8x32xf32, #tpu.memory_space<vmem>>, %arg6: memref<8x1xf32, #tpu.memory_space<vmem>>, %arg7: memref<1x8x128xf32, #tpu.memory_space<vmem>>, %arg8: memref<3xf32, #tpu.memory_space<smem>>) attributes {dimension_semantics = [#tpu.dimension_semantics<parallel>, #tpu.dimension_semantics<arbitrary>], iteration_bounds = array<i64: 1, 1>, scalar_prefetch = 0 : i64, scratch_operands = 1 : i64, tpu.core_type = #tpu.core_type<tc>, window_params = [{transform_indices = @transform_0, window_bounds = array<i64: 8, 32>}, {transform_indices = @transform_1, window_bounds = array<i64: 8, 32>}, {transform_indices = @transform_2, window_bounds = array<i64: 8, 32>}, {transform_indices = @transform_3, window_bounds = array<i64: 8, 32>}, {transform_indices = @transform_4, window_bounds = array<i64: 8, 1>}, {transform_indices = @transform_5, window_bounds = array<i64: 1, 8, 128>}]} {
    %c0_i32 = arith.constant 0 : i32
    %0 = arith.cmpi eq, %arg1, %c0_i32 : i32
    %1 = arith.extui %0 : i1 to i32
    %c0_i32_0 = arith.constant 0 : i32
    %2 = arith.cmpi ne, %1, %c0_i32_0 : i32
    scf.if %2 {
      %cst_20 = arith.constant 0.000000e+00 : f32
      %c0_21 = arith.constant 0 : index
      %48 = memref.load %arg8[%c0_21] : memref<3xf32, #tpu.memory_space<smem>>
      memref.store %cst_20, %arg8[%c0_21] : memref<3xf32, #tpu.memory_space<smem>>
      %cst_22 = arith.constant 0.000000e+00 : f32
      %c1_23 = arith.constant 1 : index
      %49 = memref.load %arg8[%c1_23] : memref<3xf32, #tpu.memory_space<smem>>
      memref.store %cst_22, %arg8[%c1_23] : memref<3xf32, #tpu.memory_space<smem>>
      %cst_24 = arith.constant 0.000000e+00 : f32
      %c2_25 = arith.constant 2 : index
      %50 = memref.load %arg8[%c2_25] : memref<3xf32, #tpu.memory_space<smem>>
      memref.store %cst_24, %arg8[%c2_25] : memref<3xf32, #tpu.memory_space<smem>>
    } else {
    }
    %c0 = arith.constant 0 : index
    %c0_1 = arith.constant 0 : index
    %3 = vector.load %arg2[%c0, %c0_1] : memref<8x32xf32, #tpu.memory_space<vmem>>, vector<8x32xf32>
    %c0_2 = arith.constant 0 : index
    %c0_3 = arith.constant 0 : index
    %4 = vector.load %arg3[%c0_2, %c0_3] : memref<8x32xf32, #tpu.memory_space<vmem>>, vector<8x32xf32>
    %c0_4 = arith.constant 0 : index
    %c0_5 = arith.constant 0 : index
    %5 = vector.load %arg4[%c0_4, %c0_5] : memref<8x32xf32, #tpu.memory_space<vmem>>, vector<8x32xf32>
    %c0_6 = arith.constant 0 : index
    %c0_7 = arith.constant 0 : index
    %6 = vector.load %arg5[%c0_6, %c0_7] : memref<8x32xf32, #tpu.memory_space<vmem>>, vector<8x32xf32>
    %c0_8 = arith.constant 0 : index
    %c0_9 = arith.constant 0 : index
    %7 = vector.load %arg6[%c0_8, %c0_9] : memref<8x1xf32, #tpu.memory_space<vmem>>, vector<8x1xf32>
    %8 = arith.subf %3, %4 : vector<8x32xf32>
    %9 = arith.mulf %8, %8 : vector<8x32xf32>
    %cst = arith.constant dense<0.000000e+00> : vector<8xf32>
    %10 = vector.multi_reduction <add>, %9, %cst [1] : vector<8x32xf32> to vector<8xf32>
    %11 = vector.shape_cast %10 : vector<8xf32> to vector<8x1xf32>
    %12 = math.sqrt %11 : vector<8x1xf32>
    %13 = arith.subf %5, %6 : vector<8x32xf32>
    %14 = arith.mulf %13, %13 : vector<8x32xf32>
    %cst_10 = arith.constant dense<0.000000e+00> : vector<8xf32>
    %15 = vector.multi_reduction <add>, %14, %cst_10 [1] : vector<8x32xf32> to vector<8xf32>
    %16 = vector.shape_cast %15 : vector<8xf32> to vector<8x1xf32>
    %17 = math.sqrt %16 : vector<8x1xf32>
    %18 = arith.subf %12, %7 : vector<8x1xf32>
    %19 = arith.subf %3, %5 : vector<8x32xf32>
    %20 = arith.subf %12, %17 : vector<8x1xf32>
    %c0_11 = arith.constant 0 : index
    %21 = memref.load %arg8[%c0_11] : memref<3xf32, #tpu.memory_space<smem>>
    %22 = arith.mulf %18, %18 : vector<8x1xf32>
    %23 = vector.shape_cast %22 : vector<8x1xf32> to vector<1x8x1xf32>
    %cst_12 = arith.constant dense<0.000000e+00> : vector<1xf32>
    %24 = vector.multi_reduction <add>, %23, %cst_12 [1, 2] : vector<1x8x1xf32> to vector<1xf32>
    %25 = vector.shape_cast %24 : vector<1xf32> to vector<1x1x1xf32>
    %26 = vector.extract %25[0, 0, 0] : f32 from vector<1x1x1xf32>
    %27 = arith.addf %21, %26 : f32
    %c0_13 = arith.constant 0 : index
    %28 = memref.load %arg8[%c0_13] : memref<3xf32, #tpu.memory_space<smem>>
    memref.store %27, %arg8[%c0_13] : memref<3xf32, #tpu.memory_space<smem>>
    %c1 = arith.constant 1 : index
    %29 = memref.load %arg8[%c1] : memref<3xf32, #tpu.memory_space<smem>>
    %30 = arith.mulf %19, %19 : vector<8x32xf32>
    %31 = vector.shape_cast %30 : vector<8x32xf32> to vector<1x8x32xf32>
    %cst_14 = arith.constant dense<0.000000e+00> : vector<1xf32>
    %32 = vector.multi_reduction <add>, %31, %cst_14 [1, 2] : vector<1x8x32xf32> to vector<1xf32>
    %33 = vector.shape_cast %32 : vector<1xf32> to vector<1x1x1xf32>
    %34 = vector.extract %33[0, 0, 0] : f32 from vector<1x1x1xf32>
    %35 = arith.addf %29, %34 : f32
    %c1_15 = arith.constant 1 : index
    %36 = memref.load %arg8[%c1_15] : memref<3xf32, #tpu.memory_space<smem>>
    memref.store %35, %arg8[%c1_15] : memref<3xf32, #tpu.memory_space<smem>>
    %c2 = arith.constant 2 : index
    %37 = memref.load %arg8[%c2] : memref<3xf32, #tpu.memory_space<smem>>
    %38 = arith.mulf %20, %20 : vector<8x1xf32>
    %39 = vector.shape_cast %38 : vector<8x1xf32> to vector<1x8x1xf32>
    %cst_16 = arith.constant dense<0.000000e+00> : vector<1xf32>
    %40 = vector.multi_reduction <add>, %39, %cst_16 [1, 2] : vector<1x8x1xf32> to vector<1xf32>
    %41 = vector.shape_cast %40 : vector<1xf32> to vector<1x1x1xf32>
    %42 = vector.extract %41[0, 0, 0] : f32 from vector<1x1x1xf32>
    %43 = arith.addf %37, %42 : f32
    %c2_17 = arith.constant 2 : index
    %44 = memref.load %arg8[%c2_17] : memref<3xf32, #tpu.memory_space<smem>>
    memref.store %43, %arg8[%c2_17] : memref<3xf32, #tpu.memory_space<smem>>
    %c0_i32_18 = arith.constant 0 : i32
    %45 = arith.cmpi eq, %arg1, %c0_i32_18 : i32
    %46 = arith.extui %45 : i1 to i32
    %c0_i32_19 = arith.constant 0 : i32
    %47 = arith.cmpi ne, %46, %c0_i32_19 : i32
    scf.if %47 {
      %48 = tpu.iota {dimensions = array<i32: 1>} : vector<1x8x128xi32>
      %49 = tpu.iota {dimensions = array<i32: 2>} : vector<1x8x128xi32>
      %c0_i32_20 = arith.constant 0 : i32
      %50 = vector.broadcast %c0_i32_20 : i32 to vector<1x8x128xi32>
      %51 = arith.cmpi eq, %48, %50 : vector<1x8x128xi32>
      %c0_i32_21 = arith.constant 0 : i32
      %52 = vector.broadcast %c0_i32_21 : i32 to vector<1x8x128xi32>
      %53 = arith.cmpi eq, %49, %52 : vector<1x8x128xi32>
      %54 = arith.andi %51, %53 : vector<1x8x128xi1>
      %c0_22 = arith.constant 0 : index
      %55 = memref.load %arg8[%c0_22] : memref<3xf32, #tpu.memory_space<smem>>
      %cst_23 = arith.constant 0.000000e+00 : f32
      %56 = vector.broadcast %55 : f32 to vector<1x8x128xf32>
      %57 = vector.broadcast %cst_23 : f32 to vector<1x8x128xf32>
      %58 = arith.select %54, %56, %57 : vector<1x8x128xi1>, vector<1x8x128xf32>
      %c1_i32 = arith.constant 1 : i32
      %59 = vector.broadcast %c1_i32 : i32 to vector<1x8x128xi32>
      %60 = arith.cmpi eq, %49, %59 : vector<1x8x128xi32>
      %61 = arith.andi %51, %60 : vector<1x8x128xi1>
      %c1_24 = arith.constant 1 : index
      %62 = memref.load %arg8[%c1_24] : memref<3xf32, #tpu.memory_space<smem>>
      %63 = vector.broadcast %62 : f32 to vector<1x8x128xf32>
      %64 = arith.select %61, %63, %58 : vector<1x8x128xi1>, vector<1x8x128xf32>
      %c2_i32 = arith.constant 2 : i32
      %65 = vector.broadcast %c2_i32 : i32 to vector<1x8x128xi32>
      %66 = arith.cmpi eq, %49, %65 : vector<1x8x128xi32>
      %67 = arith.andi %51, %66 : vector<1x8x128xi1>
      %c2_25 = arith.constant 2 : index
      %68 = memref.load %arg8[%c2_25] : memref<3xf32, #tpu.memory_space<smem>>
      %69 = vector.broadcast %68 : f32 to vector<1x8x128xf32>
      %70 = arith.select %67, %69, %64 : vector<1x8x128xi1>, vector<1x8x128xf32>
      %c0_26 = arith.constant 0 : index
      %c0_27 = arith.constant 0 : index
      %c0_28 = arith.constant 0 : index
      %71 = vector.load %arg7[%c0_26, %c0_27, %c0_28] : memref<1x8x128xf32, #tpu.memory_space<vmem>>, vector<1x8x128xf32>
      tpu.vector_store %arg7[%c0_26, %c0_27, %c0_28], %70 {strides = array<i32>} : memref<1x8x128xf32, #tpu.memory_space<vmem>>, vector<1x8x128xf32>,
    } else {
    }
    return
  }
  func.func @transform_0(%arg0: i32, %arg1: i32) -> (i32, i32) {
    %c1_i32 = arith.constant 1 : i32
    %0 = arith.muli %arg0, %c1_i32 : i32
    %1 = arith.addi %0, %arg1 : i32
    %c0_i32 = arith.constant 0 : i32
    %c0_i32_0 = arith.constant 0 : i32
    return %1, %c0_i32 : i32, i32
  }
  func.func @transform_1(%arg0: i32, %arg1: i32) -> (i32, i32) {
    %c1_i32 = arith.constant 1 : i32
    %0 = arith.muli %arg0, %c1_i32 : i32
    %1 = arith.addi %0, %arg1 : i32
    %c0_i32 = arith.constant 0 : i32
    %c0_i32_0 = arith.constant 0 : i32
    return %1, %c0_i32 : i32, i32
  }
  func.func @transform_2(%arg0: i32, %arg1: i32) -> (i32, i32) {
    %c1_i32 = arith.constant 1 : i32
    %0 = arith.muli %arg0, %c1_i32 : i32
    %1 = arith.addi %0, %arg1 : i32
    %c0_i32 = arith.constant 0 : i32
    %c0_i32_0 = arith.constant 0 : i32
    return %1, %c0_i32 : i32, i32
  }
  func.func @transform_3(%arg0: i32, %arg1: i32) -> (i32, i32) {
    %c1_i32 = arith.constant 1 : i32
    %0 = arith.muli %arg0, %c1_i32 : i32
    %1 = arith.addi %0, %arg1 : i32
    %c0_i32 = arith.constant 0 : i32
    %c0_i32_0 = arith.constant 0 : i32
    return %1, %c0_i32 : i32, i32
  }
  func.func @transform_4(%arg0: i32, %arg1: i32) -> (i32, i32) {
    %c1_i32 = arith.constant 1 : i32
    %0 = arith.muli %arg0, %c1_i32 : i32
    %1 = arith.addi %0, %arg1 : i32
    %c0_i32 = arith.constant 0 : i32
    %c0_i32_0 = arith.constant 0 : i32
    return %1, %c0_i32 : i32, i32
  }
  func.func @transform_5(%arg0: i32, %arg1: i32) -> (i32, i32, i32) {
    %c0_i32 = arith.constant 0 : i32
    %c0_i32_0 = arith.constant 0 : i32
    %c0_i32_1 = arith.constant 0 : i32
    return %arg0, %c0_i32, %c0_i32_0 : i32, i32, i32
  }
}

</mosaic_0001>

<llo_original>
// kernel: tpu_custom_call.1
$region0: #{tpu_custom_call.1}
  #allocation0 [shape = 'u32[]', space=smem, size = 0x4, offset = 0x4, fixed_abs, tag = 'smem constant byte address 0x4 - core index']
  #allocation1 [shape = 'u32[144,128]{1,0:T(1,128)}', space=vmem, size = 0x12000, scoped, tag = 'internal scratch']
  #allocation2 [shape = 'f32[3]{0:T(128)}', space=smem, size = 0x200, scoped, tag = 'scratch operand']
  %s0 = inlined_call_operand.vmem [shape: f32[8,32], index: 0, kind: input, shape index: {}]
  %s1 = inlined_call_operand.hbm [shape: f32[8,32], index: 1, kind: input, shape index: {}]
  %s2 = inlined_call_operand.vmem [shape: f32[8,32], index: 2, kind: input, shape index: {}]
  %s3 = inlined_call_operand.hbm [shape: f32[8,32], index: 3, kind: input, shape index: {}]
  %s4 = inlined_call_operand.vmem [shape: f32[8,1], index: 4, kind: input, shape index: {}]
  %s5 = inlined_call_operand.hbm [shape: f32[1,8,128], index: 5, kind: output, shape index: {}]
  %s6 = sld [smem:[#allocation0]]
  $region46: #{tpu_custom_call.1} parent=0
    _
  %s8 = ssub.s32 1, %s6
  %s9 = scalar_select 0, %s8, %s6
  $region1: #{tpu_custom_call.1} parent=0
    #allocation3 [shape = 'u8[4096]{0}', space=vmem, size = 0x1000, scoped, tag = 'input window, operand 1, single buffered']
    #allocation4 [shape = 's32[1]{0}', space=sflag, size = 0x4, scoped, tag = 'scoped memory for tpu_custom_call.1']
    #allocation5 [shape = 's32[1]{0}', space=sflag, size = 0x4, scoped, tag = 'scoped memory for tpu_custom_call.1']
    #allocation6 [shape = 'u8[4096]{0}', space=vmem, size = 0x1000, scoped, tag = 'input window, operand 3, single buffered']
    #allocation7 [shape = 's32[1]{0}', space=sflag, size = 0x4, scoped, tag = 'scoped memory for tpu_custom_call.1']
    #allocation8 [shape = 'u8[4096]{0}', space=vmem, size = 0x1000, scoped, tag = 'output window, operand 0, single buffered']
    %10 = vsyncpa [#allocation4], 0
    %11 = vsyncpa [#allocation7], 0
    %12 = vsyncpa [#allocation5], 0
    // Predicated region
    $region2: #{tpu_custom_call.1} parent=1 // pred_check
      _
    $region3: #{tpu_custom_call.1} parent=1 // pred_check_branch
      %14 = sbr.rel (0) target = $region5
    $region4: #{tpu_custom_call.1} parent=1 // pred_region
      %s15 = sadd.s32 0, 0
      %p16 = scmp.lt.s32.totalorder %s15, 0
      %s17 = scalar_select %p16, %s15, 0
      %s18 = smul.addr %s17, 8
      %s19 = scalar_lea.vmem %s0, %s18
      %s20 = sadd.s32 0, 0
    $region5: #{tpu_custom_call.1} parent=1 // pred_fallthru
      _
    // Predicated region
    $region6: #{tpu_custom_call.1} parent=1 // pred_check
      _
    $region7: #{tpu_custom_call.1} parent=1 // pred_check_branch
      %22 = sbr.rel (0) target = $region9
    $region8: #{tpu_custom_call.1} parent=1 // pred_region
      %s23 = sadd.s32 0, 0
      %s25 = ssub.s32 128, 128
      %26 = vsyncadd [#allocation4], %s25
      %s27 = smul.addr %s23, 128
      %s28 = scalar_lea.hbm %s1, %s27
      %s30 = sshll.u32 [#allocation3], 4
      %s31 = int_to_ptr.vmem [resolvable:$true] %s30
      %33 = dma.hbm_to_vmem [thread:$0]  %s28, 128, %s31, [#allocation4]
    $region9: #{tpu_custom_call.1} parent=1 // pred_fallthru
      _
    // Predicated region
    $region10: #{tpu_custom_call.1} parent=1 // pred_check
      _
    $region11: #{tpu_custom_call.1} parent=1 // pred_check_branch
      %35 = sbr.rel (0) target = $region13
    $region12: #{tpu_custom_call.1} parent=1 // pred_region
      %s36 = sadd.s32 0, 0
      %p37 = scmp.lt.s32.totalorder %s36, 0
      %s38 = scalar_select %p37, %s36, 0
      %s39 = smul.addr %s38, 8
      %s40 = scalar_lea.vmem %s2, %s39
      %s41 = sadd.s32 0, 0
    $region13: #{tpu_custom_call.1} parent=1 // pred_fallthru
      _
    // Predicated region
    $region14: #{tpu_custom_call.1} parent=1 // pred_check
      _
    $region15: #{tpu_custom_call.1} parent=1 // pred_check_branch
      %43 = sbr.rel (0) target = $region17
    $region16: #{tpu_custom_call.1} parent=1 // pred_region
      %s44 = sadd.s32 0, 0
      %s46 = ssub.s32 128, 128
      %47 = vsyncadd [#allocation7], %s46
      %s48 = smul.addr %s44, 128
      %s49 = scalar_lea.hbm %s3, %s48
      %s51 = sshll.u32 [#allocation6], 4
      %s52 = int_to_ptr.vmem [resolvable:$true] %s51
      %54 = dma.hbm_to_vmem [thread:$0]  %s49, 128, %s52, [#allocation7]
    $region17: #{tpu_custom_call.1} parent=1 // pred_fallthru
      _
    // Predicated region
    $region18: #{tpu_custom_call.1} parent=1 // pred_check
      _
    $region19: #{tpu_custom_call.1} parent=1 // pred_check_branch
      %56 = sbr.rel (0) target = $region21
    $region20: #{tpu_custom_call.1} parent=1 // pred_region
      %s57 = sadd.s32 0, 0
      %p58 = scmp.lt.s32.totalorder %s57, 0
      %s59 = scalar_select %p58, %s57, 0
      %s60 = smul.addr %s59, 8
      %s61 = scalar_lea.vmem %s4, %s60
      %s62 = sadd.s32 0, 0
    $region21: #{tpu_custom_call.1} parent=1 // pred_fallthru
      _
    // Predicated region
    $region22: #{tpu_custom_call.1} parent=1 // pred_check
      _
    $region23: #{tpu_custom_call.1} parent=1 // pred_check_branch
      %64 = sbr.rel (0) target = $region25
    $region24: #{tpu_custom_call.1} parent=1 // pred_region
      %65 = dma.done [#allocation4], 128
    $region25: #{tpu_custom_call.1} parent=1 // pred_fallthru
      _
    // Predicated region
    $region26: #{tpu_custom_call.1} parent=1 // pred_check
      _
    $region27: #{tpu_custom_call.1} parent=1 // pred_check_branch
      %67 = sbr.rel (0) target = $region29
    $region28: #{tpu_custom_call.1} parent=1 // pred_region
      %68 = dma.done [#allocation7], 128
    $region29: #{tpu_custom_call.1} parent=1 // pred_fallthru
      _
    %s69 = sadd.s32 0, 0
    %p70 = scmp.lt.s32.totalorder %s69, 0
    %s71 = scalar_select %p70, %s69, 0
    %s72 = smul.addr %s71, 8
    %s73 = scalar_lea.vmem %s0, %s72
    %s74 = sadd.s32 0, 0
    %p75 = scmp.lt.s32.totalorder %s74, 0
    %s76 = scalar_select %p75, %s74, 0
    %s77 = smul.addr %s76, 8
    %s78 = scalar_lea.vmem %s2, %s77
    %s79 = sadd.s32 0, 0
    %p80 = scmp.lt.s32.totalorder %s79, 0
    %s81 = scalar_select %p80, %s79, 0
    %s82 = smul.addr %s81, 8
    %s83 = scalar_lea.vmem %s4, %s82
    %s84 = sadd.s32 0, 0
    %p85 = scmp.lt.s32.totalorder %s84, 0
    %s86 = scalar_select %p85, %s84, 0
    %s87 = smul.addr %s86, 8
    %s88 = scalar_lea.vmem %s0, %s87
    %s89 = sadd.s32 0, 0
    %s90 = sadd.s32 0, 0
    %s91 = sadd.s32 0, 0
    %p92 = scmp.lt.s32.totalorder %s91, 0
    %s93 = scalar_select %p92, %s91, 0
    %s94 = smul.addr %s93, 8
    %s95 = scalar_lea.vmem %s2, %s94
    %s96 = sadd.s32 0, 0
    %s97 = sadd.s32 0, 0
    %s98 = sadd.s32 0, 0
    %p99 = scmp.lt.s32.totalorder %s98, 0
    %s100 = scalar_select %p99, %s98, 0
    %s101 = smul.addr %s100, 8
    %s102 = scalar_lea.vmem %s4, %s101
    %s103 = sadd.s32 0, 0
    %p104 = scmp.eq.s32.totalorder 0, 0
    // Predicated region
    $region30: #{tpu_custom_call.1} parent=1 // pred_check
      %p105 = pneg %p104
    $region31: #{tpu_custom_call.1} parent=1 // pred_check_branch
      %107 = sbr.rel (%p105) target = $region33
    $region32: #{tpu_custom_call.1} parent=1 // pred_region
      %s108 = scalar_lea.smem [#allocation2], 0
      %109 = sst [smem:[%s108]] 0.0
      %s110 = scalar_lea.smem [#allocation2], 1
      %111 = sst [smem:[%s110]] 0.0
      %s112 = scalar_lea.smem [#allocation2], 2
      %113 = sst [smem:[%s112]] 0.0
    $region33: #{tpu_custom_call.1} parent=1 // pred_fallthru
      _
    %v114 = vld [vmem:[%s88] sm:$0xff]
    %v115 = vld [vmem:[#allocation3] sm:$0xff]
    %v116 = vld [vmem:[%s95] sm:$0xff]
    %v117 = vld [vmem:[#allocation6] sm:$0xff]
    %v118 = vld [vmem:[%s102] sm:$0xff]
    %v119 = vsub.f32 %v114, %v115
    %v120 = vmul.f32 %v119, %v119
    %vm121 = vcmask 261120
    %v122 = vsel %vm121, %v120, 0.0
    %123 = vadd.xlane.f32.xlu0 %v122
    %v124 = vpop.xlane.xlu0 %123
    %v125 = vrsqrt.pop %v124
    %v126 = vmul.f32 %v124, %v125
    %vm127 = vcmp.eq.f32.partialorder %v124, inf
    %v128 = vsel %vm127, %v124, %v126
    %vm129 = vcmp.eq.f32.partialorder %v124, 0.0
    %v130 = vand.u32 %v124, 2147483648
    %v131 = vsel %vm129, %v130, %v128
    %v132 = vsub.f32 %v116, %v117
    %v133 = vmul.f32 %v132, %v132
    %v134 = vsel %vm121, %v133, 0.0
    %135 = vadd.xlane.f32.xlu0 %v134
    %v136 = vpop.xlane.xlu0 %135
    %v137 = vrsqrt.pop %v136
    %v138 = vmul.f32 %v136, %v137
    %vm139 = vcmp.eq.f32.partialorder %v136, inf
    %v140 = vsel %vm139, %v136, %v138
    %vm141 = vcmp.eq.f32.partialorder %v136, 0.0
    %v142 = vand.u32 %v136, 2147483648
    %v143 = vsel %vm141, %v142, %v140
    %v144 = vsub.f32 %v131, %v118
    %v145 = vsub.f32 %v114, %v116
    %v146 = vsub.f32 %v131, %v143
    %s147 = sld [smem:[#allocation2]]
    %v148 = vmul.f32 %v144, %v144
    %vm149 = vcmask 7168
    %v150 = vsel %vm149, %v148, 0.0
    %151 = vadd.xlane.f32.xlu0 %v150
    %v152 = vpop.xlane.xlu0 %151
    %v153 = vrot.slane %v152, 4
    %v154 = vadd.f32 %v152, %v153
    %v155 = vrot.slane %v154, 2
    %v156 = vadd.f32 %v154, %v155
    %v157 = vrot.slane %v156, 1
    %v158 = vadd.f32 %v156, %v157
    %s159 = vtos %v158
    %s160 = sadd.f32 %s147, %s159
    %s161 = scalar_lea.smem [#allocation2], 0
    %162 = sst [smem:[%s161]] %s160
    %s163 = sld [smem:[#allocation2 + $0x1]]
    %v164 = vmul.f32 %v145, %v145
    %v165 = vsel %vm121, %v164, 0.0
    %166 = vadd.xlane.f32.xlu0 %v165
    %v167 = vpop.xlane.xlu0 %166
    %v168 = vrot.slane %v167, 4
    %v169 = vadd.f32 %v167, %v168
    %v170 = vrot.slane %v169, 2
    %v171 = vadd.f32 %v169, %v170
    %v172 = vrot.slane %v171, 1
    %v173 = vadd.f32 %v171, %v172
    %s174 = vtos %v173
    %s175 = sadd.f32 %s163, %s174
    %s176 = scalar_lea.smem [#allocation2], 1
    %177 = sst [smem:[%s176]] %s175
    %s178 = sld [smem:[#allocation2 + $0x2]]
    %v179 = vmul.f32 %v146, %v146
    %v180 = vsel %vm149, %v179, 0.0
    %181 = vadd.xlane.f32.xlu0 %v180
    %v182 = vpop.xlane.xlu0 %181
    %v183 = vrot.slane %v182, 4
    %v184 = vadd.f32 %v182, %v183
    %v185 = vrot.slane %v184, 2
    %v186 = vadd.f32 %v184, %v185
    %v187 = vrot.slane %v186, 1
    %v188 = vadd.f32 %v186, %v187
    %s189 = vtos %v188
    %s190 = sadd.f32 %s178, %s189
    %s191 = scalar_lea.smem [#allocation2], 2
    %192 = sst [smem:[%s191]] %s190
    // Predicated region
    $region34: #{tpu_custom_call.1} parent=1 // pred_check
      %p193 = pneg %p104
    $region35: #{tpu_custom_call.1} parent=1 // pred_check_branch
      %195 = sbr.rel (%p193) target = $region37
    $region36: #{tpu_custom_call.1} parent=1 // pred_region
      %v196 = vlaneseq
      %v197 = vshrl.u32 %v196, 7
      %v198 = vlaneseq
      %v199 = vand.u32 %v198, 127
      %vm200 = vcmp.eq.s32.totalorder %v197, 0
      %vm201 = vcmp.eq.s32.totalorder %v199, 0
      %vm202 = vmand %vm200, %vm201
      %s203 = sld [smem:[#allocation2]]
      %v204 = vstv %s203
      %v205 = vsel %vm202, %v204, 0.0
      %vm206 = vcmp.eq.s32.totalorder %v199, 1
      %vm207 = vmand %vm200, %vm206
      %s208 = sld [smem:[#allocation2 + $0x1]]
      %v209 = vstv %s208
      %v210 = vsel %vm207, %v209, %v205
      %vm211 = vcmp.eq.s32.totalorder %v199, 2
      %vm212 = vmand %vm200, %vm211
      %s213 = sld [smem:[#allocation2 + $0x2]]
      %v214 = vstv %s213
      %v215 = vsel %vm212, %v214, %v210
      %216 = vst [vmem:[#allocation8] sm:$0xff] %v215
    $region37: #{tpu_custom_call.1} parent=1 // pred_fallthru
      _
    // Predicated region
    $region38: #{tpu_custom_call.1} parent=1 // pred_check
      _
    $region39: #{tpu_custom_call.1} parent=1 // pred_check_branch
      %218 = sbr.rel (0) target = $region41
    $region40: #{tpu_custom_call.1} parent=1 // pred_region
      %s220 = ssub.s32 128, 128
      %221 = vsyncadd [#allocation5], %s220
      %s223 = sshll.u32 [#allocation8], 4
      %s224 = int_to_ptr.vmem [resolvable:$true] %s223
      %226 = dma.vmem_to_hbm [thread:$0]  %s224, 128, %s5, [#allocation5]
    $region41: #{tpu_custom_call.1} parent=1 // pred_fallthru
      _
    // Predicated region
    $region42: #{tpu_custom_call.1} parent=1 // pred_check
      _
    $region43: #{tpu_custom_call.1} parent=1 // pred_check_branch
      %228 = sbr.rel (0) target = $region45
    $region44: #{tpu_custom_call.1} parent=1 // pred_region
      %229 = dma.done [#allocation5], 128
    $region45: #{tpu_custom_call.1} parent=1 // pred_fallthru
      _
    %230 = vsyncpa [#allocation4], 1
    %231 = vsyncpa [#allocation7], 1
    %232 = vsyncpa [#allocation5], 1

</llo_original>
